<compile_context>
chip_gen: v6e
topology: v6e:2x2x1
jax: 0.10.0
libtpu: 0.0.40
codegen_flags: <defaults>
</compile_context>

<pallas_src>
import jax
import jax.numpy as jnp
from jax.experimental import pallas as pl
from jax.experimental.pallas import tpu as pltpu

# bf16 weights halve HBM->VMEM weight traffic and feed the MXU natively.
WEIGHT_DTYPE = jnp.bfloat16

_LANE = 128
_SUBLANE = 8
# PyTorch packs gates as (i, f, g, o); we repack to (i, f, o, g) so one sigmoid
# covers a contiguous 3*Hp slice and one tanh covers the last Hp slice.
_GATE_PERM = (0, 1, 3, 2)


def _round_up(x, m):
    return (x + m - 1) // m * m


# ---------------------------------------------------------------------------
# Fused kernel: L stacked LSTM layers (one timestep) + output linear
# ---------------------------------------------------------------------------
def fused_lstm_decoder_kernel(x_ref, h0_ref, c0_ref, w_ref, b_ref,
                              wlin_ref, blin_ref,
                              hn_ref, cn_ref, out_ref,
                              xh_scr):
    """Single grid step; all operands VMEM-resident.

    x_ref:    (Bp, W_in)        padded decoder input (f32)
    h0_ref:   (L, Bp, Hp)       initial hidden states (f32)
    c0_ref:   (L, Bp, Hp)       initial cell states (f32)
    w_ref:    (L, W_in+Hp, 4Hp) fused [W_ih^T ; W_hh^T], gate order (i,f,o,g), bf16
    b_ref:    (L, 1, 4Hp)       b_ih + b_hh, gate-block padded, f32
    wlin_ref: (Hp, Ip)          linear W^T, bf16
    blin_ref: (1, Ip)           linear bias, f32
    hn_ref:   (L, Bp, Hp)       new hidden states (output, f32)
    cn_ref:   (L, Bp, Hp)       new cell states (output, f32)
    out_ref:  (Bp, Ip)          linear output (f32)
    xh_scr:   (Bp, W_in+Hp)     bf16 fused-K operand carry
    """
    L, Bp, Hp = h0_ref.shape
    W_in = x_ref.shape[1]

    # Layer-0 input occupies the first W_in lanes of the fused-K carry buffer.
    xh_scr[:, :W_in] = x_ref[...].astype(jnp.bfloat16)

    h_new = None
    for l in range(L):                      # statically unrolled layer loop
        if l > 0:
            # Previous layer's hidden state becomes this layer's input.
            xh_scr[:, :Hp] = h_new.astype(jnp.bfloat16)
            if W_in > Hp and l == 1:
                # Zero the stale tail of the layer-0 input exactly once.
                xh_scr[:, Hp:W_in] = jnp.zeros((Bp, W_in - Hp), jnp.bfloat16)
        # This layer's incoming hidden state fills the W_hh half of K.
        xh_scr[:, W_in:] = h0_ref[l].astype(jnp.bfloat16)

        # One fused (Bp, W_in+Hp) @ (W_in+Hp, 4Hp) bf16 MXU matmul, f32 acc.
        gates = jnp.dot(xh_scr[...], w_ref[l],
                        preferred_element_type=jnp.float32) + b_ref[l]

        ifo = jax.nn.sigmoid(gates[:, :3 * Hp])    # i, f, o in one EUP pass
        g_g = jnp.tanh(gates[:, 3 * Hp:])
        i_g = ifo[:, 0 * Hp:1 * Hp]
        f_g = ifo[:, 1 * Hp:2 * Hp]
        o_g = ifo[:, 2 * Hp:3 * Hp]

        c_new = f_g * c0_ref[l] + i_g * g_g
        h_new = o_g * jnp.tanh(c_new)

        hn_ref[l] = h_new
        cn_ref[l] = c_new

    # Fused output linear on the last layer's hidden state (bf16 MXU, f32 acc).
    out_ref[...] = (jnp.dot(h_new.astype(jnp.bfloat16), wlin_ref[...],
                            preferred_element_type=jnp.float32)
                    + blin_ref[...])


def _fused_pallas_call(x_pad, h0_pad, c0_pad, w, b, wlin_t, blin):
    L, Bp, Hp = h0_pad.shape
    K, G4 = w.shape[1], w.shape[2]
    W_in = x_pad.shape[1]
    Ip = wlin_t.shape[1]

    flops = L * (2 * Bp * K * G4 + 8 * Bp * Hp) + 2 * Bp * Hp * Ip
    transcendentals = L * Bp * (G4 + Hp)
    bytes_accessed = (sum(int(a.size) * a.dtype.itemsize
                          for a in (x_pad, h0_pad, c0_pad, w, b, wlin_t, blin))
                      + (2 * L * Bp * Hp + Bp * Ip) * 4)

    grid_spec = pltpu.PrefetchScalarGridSpec(
        num_scalar_prefetch=0,
        grid=(1,),
        in_specs=[
            pl.BlockSpec((Bp, W_in), lambda i: (0, 0)),      # x
            pl.BlockSpec((L, Bp, Hp), lambda i: (0, 0, 0)),  # h0
            pl.BlockSpec((L, Bp, Hp), lambda i: (0, 0, 0)),  # c0
            pl.BlockSpec((L, K, G4), lambda i: (0, 0, 0)),   # fused [Wih;Whh]^T
            pl.BlockSpec((L, 1, G4), lambda i: (0, 0, 0)),   # gate bias
            pl.BlockSpec((Hp, Ip), lambda i: (0, 0)),        # W_lin^T
            pl.BlockSpec((1, Ip), lambda i: (0, 0)),         # b_lin
        ],
        out_specs=(
            pl.BlockSpec((L, Bp, Hp), lambda i: (0, 0, 0)),  # h_n
            pl.BlockSpec((L, Bp, Hp), lambda i: (0, 0, 0)),  # c_n
            pl.BlockSpec((Bp, Ip), lambda i: (0, 0)),        # output
        ),
        scratch_shapes=[pltpu.VMEM((Bp, K), jnp.bfloat16)],  # fused-K operand
    )

    return pl.pallas_call(
        fused_lstm_decoder_kernel,
        grid_spec=grid_spec,
        out_shape=(jax.ShapeDtypeStruct((L, Bp, Hp), jnp.float32),
                   jax.ShapeDtypeStruct((L, Bp, Hp), jnp.float32),
                   jax.ShapeDtypeStruct((Bp, Ip), jnp.float32)),
        compiler_params=pltpu.CompilerParams(
            dimension_semantics=("arbitrary",),
            vmem_limit_bytes=64 * 1024 * 1024),
        cost_estimate=pl.CostEstimate(flops=flops,
                                      transcendentals=transcendentals,
                                      bytes_accessed=bytes_accessed),
    )(x_pad, h0_pad, c0_pad, w, b, wlin_t, blin)


# ---------------------------------------------------------------------------
# Parameter init (PyTorch-shaped) and packing into padded/fused kernel layout
# ---------------------------------------------------------------------------
def init_lstm_decoder_params(key, input_size, hidden_size, num_layers=1):
    """uniform(-1/sqrt(H), 1/sqrt(H)) like nn.LSTM / nn.Linear defaults.
    Weights stored in bf16 — both reference and kernel consume these."""
    bound = float(hidden_size) ** -0.5

    def u(k, shape):
        return jax.random.uniform(k, shape, jnp.float32, minval=-bound, maxval=bound)

    layers = []
    for l in range(num_layers):
        in_dim = input_size if l == 0 else hidden_size
        key, k1, k2, k3, k4 = jax.random.split(key, 5)
        layers.append({
            "w_ih": u(k1, (4 * hidden_size, in_dim)).astype(WEIGHT_DTYPE),
            "w_hh": u(k2, (4 * hidden_size, hidden_size)).astype(WEIGHT_DTYPE),
            "b_ih": u(k3, (4 * hidden_size,)),
            "b_hh": u(k4, (4 * hidden_size,)),
        })
    key, k5, k6 = jax.random.split(key, 3)
    return {
        "layers": layers,
        "w_lin": u(k5, (input_size, hidden_size)).astype(WEIGHT_DTYPE),  # (In, H)
        "b_lin": u(k6, (input_size,)),
    }


def pack_lstm_decoder_params(raw, input_size, hidden_size):
    """Per layer: transpose, reorder gate blocks to (i,f,o,g), pad each gate
    block to Hp lanes, pad rows, and concatenate [W_ih^T ; W_hh^T] along K so
    the kernel does a single fused dot per layer.  Stacked over layers."""
    Hp = _round_up(hidden_size, _LANE)
    Ip = _round_up(input_size, _LANE)
    W_in = max(Ip, Hp)
    G4 = 4 * Hp
    perm = jnp.array(_GATE_PERM)

    def repack(w_t, rows, rows_pad):
        # w_t: (rows, 4H) in (i,f,g,o) order -> (rows_pad, 4Hp) in (i,f,o,g)
        w4 = w_t.reshape(rows, 4, hidden_size)[:, perm, :]
        w4 = jnp.pad(w4, ((0, rows_pad - rows), (0, 0), (0, Hp - hidden_size)))
        return w4.reshape(rows_pad, G4)

    w_list, b_list = [], []
    for l, p in enumerate(raw["layers"]):
        in_dim = input_size if l == 0 else hidden_size
        wih_t = repack(jnp.transpose(p["w_ih"].astype(jnp.float32)), in_dim, W_in)
        whh_t = repack(jnp.transpose(p["w_hh"].astype(jnp.float32)),
                       hidden_size, Hp)
        w_list.append(jnp.concatenate([wih_t, whh_t], axis=0))   # (W_in+Hp, 4Hp)

        bias = (p["b_ih"] + p["b_hh"]).reshape(4, hidden_size)[perm]
        bias = jnp.pad(bias, ((0, 0), (0, Hp - hidden_size))).reshape(1, G4)
        b_list.append(bias)

    wlin_t = jnp.pad(jnp.transpose(raw["w_lin"].astype(jnp.float32)),
                     ((0, Hp - hidden_size), (0, Ip - input_size)))
    blin = jnp.pad(raw["b_lin"], ((0, Ip - input_size),)).reshape(1, Ip)

    return {
        "w": jnp.stack(w_list).astype(WEIGHT_DTYPE),       # (L, W_in+Hp, 4Hp)
        "b": jnp.stack(b_list).astype(jnp.float32),        # (L, 1, 4Hp)
        "wlin_t": wlin_t.astype(WEIGHT_DTYPE),             # (Hp, Ip)
        "blin": blin.astype(jnp.float32),                  # (1, Ip)
    }


# ---------------------------------------------------------------------------
# Forward wrapper
# ---------------------------------------------------------------------------
@jax.jit
def lstm_decoder_forward(packed, x_input, encoder_hidden_states):
    """x_input: (B, input_size); encoder_hidden_states: (h0, c0), each (L, B, H)."""
    h0, c0 = encoder_hidden_states
    L, B, H = h0.shape
    In = x_input.shape[1]

    Hp = packed["wlin_t"].shape[0]
    W_in = packed["w"].shape[1] - Hp
    Bp = _round_up(B, _SUBLANE)

    x_pad = jnp.pad(x_input.astype(jnp.float32), ((0, Bp - B), (0, W_in - In)))
    h0_pad = jnp.pad(h0.astype(jnp.float32), ((0, 0), (0, Bp - B), (0, Hp - H)))
    c0_pad = jnp.pad(c0.astype(jnp.float32), ((0, 0), (0, Bp - B), (0, Hp - H)))

    hn_pad, cn_pad, out_pad = _fused_pallas_call(
        x_pad, h0_pad, c0_pad, packed["w"], packed["b"],
        packed["wlin_t"], packed["blin"])

    output = out_pad[:B, :In]
    h_n = hn_pad[:, :B, :H]
    c_n = cn_pad[:, :B, :H]
    return output, (h_n, c_n)


# ---------------------------------------------------------------------------
# Pure-JAX reference (same bf16 weights / bf16 matmul operands, f32 accumulate)
# ---------------------------------------------------------------------------
def _reference_forward(raw, x_input, encoder_hidden_states):
    h0, c0 = encoder_hidden_states
    H = h0.shape[2]
    layer_in = x_input
    h_list, c_list = [], []
    for l, p in enumerate(raw["layers"]):
        w_ih = p["w_ih"]                        # bf16 (4H, in)
        w_hh = p["w_hh"]                        # bf16 (4H, H)
        bias = p["b_ih"] + p["b_hh"]
        gates = (jnp.dot(layer_in.astype(jnp.bfloat16), w_ih.T,
                         preferred_element_type=jnp.float32)
                 + jnp.dot(h0[l].astype(jnp.bfloat16), w_hh.T,
                           preferred_element_type=jnp.float32)
                 + bias)
        i = jax.nn.sigmoid(gates[:, 0 * H:1 * H])
        f = jax.nn.sigmoid(gates[:, 1 * H:2 * H])
        g = jnp.tanh(gates[:, 2 * H:3 * H])
        o = jax.nn.sigmoid(gates[:, 3 * H:4 * H])
        c_new = f * c0[l] + i * g
        h_new = o * jnp.tanh(c_new)
        h_list.append(h_new)
        c_list.append(c_new)
        layer_in = h_new
    out = (jnp.dot(layer_in.astype(jnp.bfloat16), raw["w_lin"].T,
                   preferred_element_type=jnp.float32)
           + raw["b_lin"])
    return out, (jnp.stack(h_list), jnp.stack(c_list))


# ---------------------------------------------------------------------------
if __name__ == "__main__":
    batch = 2
    input_size = 16
    hidden_size = 32
    num_layers = 2

    key = jax.random.PRNGKey(0)
    key, kp, kx, kh, kc = jax.random.split(key, 5)

    raw_params = init_lstm_decoder_params(kp, input_size, hidden_size, num_layers)
    packed_params = pack_lstm_decoder_params(raw_params, input_size, hidden_size)

    x_input = jax.random.normal(kx, (batch, input_size), jnp.float32)
    h0 = jax.random.normal(kh, (num_layers, batch, hidden_size), jnp.float32)
    c0 = jax.random.normal(kc, (num_layers, batch, hidden_size), jnp.float32)

    out, (h_n, c_n) = lstm_decoder_forward(packed_params, x_input, (h0, c0))
    jax.block_until_ready((out, h_n, c_n))

    out_ref, (h_ref, c_ref) = _reference_forward(raw_params, x_input, (h0, c0))

    assert out.shape == (batch, input_size)
    assert h_n.shape == (num_layers, batch, hidden_size)
    assert c_n.shape == (num_layers, batch, hidden_size)
    assert jnp.allclose(out, out_ref, atol=2e-3, rtol=2e-3), "output mismatch"
    assert jnp.allclose(h_n, h_ref, atol=2e-3, rtol=2e-3), "h_n mismatch"
    assert jnp.allclose(c_n, c_ref, atol=2e-3, rtol=2e-3), "c_n mismatch"

    print("KERNEL_OK")
</pallas_src>

<mosaic_0001>
module attributes {stable_mosaic.version = 11 : i64} {
  func.func @fused_lstm_decoder_kernel(%arg0: i32, %arg1: memref<8x128xf32, #tpu.memory_space<vmem>>, %arg2: memref<2x8x128xf32, #tpu.memory_space<vmem>>, %arg3: memref<2x8x128xf32, #tpu.memory_space<vmem>>, %arg4: memref<2x256x512xbf16, #tpu.memory_space<vmem>>, %arg5: memref<2x1x512xf32, #tpu.memory_space<vmem>>, %arg6: memref<128x128xbf16, #tpu.memory_space<vmem>>, %arg7: memref<1x128xf32, #tpu.memory_space<vmem>>, %arg8: memref<2x8x128xf32, #tpu.memory_space<vmem>>, %arg9: memref<2x8x128xf32, #tpu.memory_space<vmem>>, %arg10: memref<8x128xf32, #tpu.memory_space<vmem>>, %arg11: memref<8x256xbf16, #tpu.memory_space<vmem>>) attributes {dimension_semantics = [#tpu.dimension_semantics<arbitrary>], iteration_bounds = array<i64: 1>, scalar_prefetch = 0 : i64, scratch_operands = 1 : i64, tpu.core_type = #tpu.core_type<tc>, window_params = [{pipeline_mode = #tpu.pipeline_mode<synchronous>, transform_indices = @transform_0, window_bounds = array<i64: 8, 128>}, {pipeline_mode = #tpu.pipeline_mode<synchronous>, transform_indices = @transform_1, window_bounds = array<i64: 2, 8, 128>}, {pipeline_mode = #tpu.pipeline_mode<synchronous>, transform_indices = @transform_2, window_bounds = array<i64: 2, 8, 128>}, {pipeline_mode = #tpu.pipeline_mode<synchronous>, transform_indices = @transform_3, window_bounds = array<i64: 2, 256, 512>}, {pipeline_mode = #tpu.pipeline_mode<synchronous>, transform_indices = @transform_4, window_bounds = array<i64: 2, 1, 512>}, {pipeline_mode = #tpu.pipeline_mode<synchronous>, transform_indices = @transform_5, window_bounds = array<i64: 128, 128>}, {pipeline_mode = #tpu.pipeline_mode<synchronous>, transform_indices = @transform_6, window_bounds = array<i64: 1, 128>}, {pipeline_mode = #tpu.pipeline_mode<synchronous>, transform_indices = @transform_7, window_bounds = array<i64: 2, 8, 128>}, {pipeline_mode = #tpu.pipeline_mode<synchronous>, transform_indices = @transform_8, window_bounds = array<i64: 2, 8, 128>}, {pipeline_mode = #tpu.pipeline_mode<synchronous>, transform_indices = @transform_9, window_bounds = array<i64: 8, 128>}]} {
    %c0 = arith.constant 0 : index
    %c0_0 = arith.constant 0 : index
    %0 = vector.load %arg1[%c0, %c0_0] : memref<8x128xf32, #tpu.memory_space<vmem>>, vector<8x128xf32>
    %1 = arith.truncf %0 : vector<8x128xf32> to vector<8x128xbf16>
    %c0_1 = arith.constant 0 : index
    %c0_2 = arith.constant 0 : index
    %2 = vector.load %arg11[%c0_1, %c0_2] : memref<8x256xbf16, #tpu.memory_space<vmem>>, vector<8x128xbf16>
    tpu.vector_store %arg11[%c0_1, %c0_2], %1 {strides = array<i32>} : memref<8x256xbf16, #tpu.memory_space<vmem>>, vector<8x128xbf16>,
    %c0_3 = arith.constant 0 : index
    %c0_4 = arith.constant 0 : index
    %c0_5 = arith.constant 0 : index
    %3 = vector.load %arg2[%c0_3, %c0_4, %c0_5] : memref<2x8x128xf32, #tpu.memory_space<vmem>>, vector<1x8x128xf32>
    %4 = vector.shape_cast %3 : vector<1x8x128xf32> to vector<8x128xf32>
    %5 = arith.truncf %4 : vector<8x128xf32> to vector<8x128xbf16>
    %c0_6 = arith.constant 0 : index
    %c128 = arith.constant 128 : index
    %6 = vector.load %arg11[%c0_6, %c128] : memref<8x256xbf16, #tpu.memory_space<vmem>>, vector<8x128xbf16>
    tpu.vector_store %arg11[%c0_6, %c128], %5 {strides = array<i32>} : memref<8x256xbf16, #tpu.memory_space<vmem>>, vector<8x128xbf16>,
    %c0_7 = arith.constant 0 : index
    %c0_8 = arith.constant 0 : index
    %7 = vector.load %arg11[%c0_7, %c0_8] : memref<8x256xbf16, #tpu.memory_space<vmem>>, vector<8x256xbf16>
    %c0_9 = arith.constant 0 : index
    %c0_10 = arith.constant 0 : index
    %c0_11 = arith.constant 0 : index
    %8 = vector.load %arg4[%c0_9, %c0_10, %c0_11] : memref<2x256x512xbf16, #tpu.memory_space<vmem>>, vector<1x256x512xbf16>
    %9 = vector.shape_cast %8 : vector<1x256x512xbf16> to vector<256x512xbf16>
    %cst = arith.constant dense<0.000000e+00> : vector<8x512xf32>
    %10 = tpu.matmul %7, %9, %cst {dimension_numbers = #tpu.dot_dimension_numbers<[1], [0], [0], [1], [0, 0, 1, 1], [], []>} : vector<8x256xbf16>, vector<256x512xbf16>, vector<8x512xf32> -> vector<8x512xf32>
    %c0_12 = arith.constant 0 : index
    %c0_13 = arith.constant 0 : index
    %c0_14 = arith.constant 0 : index
    %11 = vector.load %arg5[%c0_12, %c0_13, %c0_14] : memref<2x1x512xf32, #tpu.memory_space<vmem>>, vector<1x1x512xf32>
    %12 = vector.shape_cast %11 : vector<1x1x512xf32> to vector<1x512xf32>
    %13 = vector.broadcast %12 : vector<1x512xf32> to vector<8x512xf32>
    %14 = arith.addf %10, %13 : vector<8x512xf32>
    %15 = vector.extract_strided_slice %14 {offsets = [0, 0], sizes = [8, 384], strides = [1, 1]} : vector<8x512xf32> to vector<8x384xf32>
    %16 = arith.negf %15 : vector<8x384xf32>
    %17 = math.exp %16 : vector<8x384xf32>
    %cst_15 = arith.constant 1.000000e+00 : f32
    %18 = vector.broadcast %cst_15 : f32 to vector<8x384xf32>
    %19 = arith.addf %18, %17 : vector<8x384xf32>
    %20 = arith.divf %18, %19 : vector<8x384xf32>
    %21 = vector.extract_strided_slice %14 {offsets = [0, 384], sizes = [8, 128], strides = [1, 1]} : vector<8x512xf32> to vector<8x128xf32>
    %22 = math.tanh %21 : vector<8x128xf32>
    %23 = vector.extract_strided_slice %20 {offsets = [0, 0], sizes = [8, 128], strides = [1, 1]} : vector<8x384xf32> to vector<8x128xf32>
    %24 = vector.extract_strided_slice %20 {offsets = [0, 128], sizes = [8, 128], strides = [1, 1]} : vector<8x384xf32> to vector<8x128xf32>
    %25 = vector.extract_strided_slice %20 {offsets = [0, 256], sizes = [8, 128], strides = [1, 1]} : vector<8x384xf32> to vector<8x128xf32>
    %c0_16 = arith.constant 0 : index
    %c0_17 = arith.constant 0 : index
    %c0_18 = arith.constant 0 : index
    %26 = vector.load %arg3[%c0_16, %c0_17, %c0_18] : memref<2x8x128xf32, #tpu.memory_space<vmem>>, vector<1x8x128xf32>
    %27 = vector.shape_cast %26 : vector<1x8x128xf32> to vector<8x128xf32>
    %28 = arith.mulf %24, %27 : vector<8x128xf32>
    %29 = arith.mulf %23, %22 : vector<8x128xf32>
    %30 = arith.addf %28, %29 : vector<8x128xf32>
    %31 = math.tanh %30 : vector<8x128xf32>
    %32 = arith.mulf %25, %31 : vector<8x128xf32>
    %c0_19 = arith.constant 0 : index
    %c0_20 = arith.constant 0 : index
    %c0_21 = arith.constant 0 : index
    %33 = vector.load %arg8[%c0_19, %c0_20, %c0_21] : memref<2x8x128xf32, #tpu.memory_space<vmem>>, vector<1x8x128xf32>
    %34 = vector.shape_cast %33 : vector<1x8x128xf32> to vector<8x128xf32>
    %35 = vector.shape_cast %32 : vector<8x128xf32> to vector<1x8x128xf32>
    tpu.vector_store %arg8[%c0_19, %c0_20, %c0_21], %35 {strides = array<i32>} : memref<2x8x128xf32, #tpu.memory_space<vmem>>, vector<1x8x128xf32>,
    %c0_22 = arith.constant 0 : index
    %c0_23 = arith.constant 0 : index
    %c0_24 = arith.constant 0 : index
    %36 = vector.load %arg9[%c0_22, %c0_23, %c0_24] : memref<2x8x128xf32, #tpu.memory_space<vmem>>, vector<1x8x128xf32>
    %37 = vector.shape_cast %36 : vector<1x8x128xf32> to vector<8x128xf32>
    %38 = vector.shape_cast %30 : vector<8x128xf32> to vector<1x8x128xf32>
    tpu.vector_store %arg9[%c0_22, %c0_23, %c0_24], %38 {strides = array<i32>} : memref<2x8x128xf32, #tpu.memory_space<vmem>>, vector<1x8x128xf32>,
    %39 = arith.truncf %32 : vector<8x128xf32> to vector<8x128xbf16>
    %c0_25 = arith.constant 0 : index
    %c0_26 = arith.constant 0 : index
    %40 = vector.load %arg11[%c0_25, %c0_26] : memref<8x256xbf16, #tpu.memory_space<vmem>>, vector<8x128xbf16>
    tpu.vector_store %arg11[%c0_25, %c0_26], %39 {strides = array<i32>} : memref<8x256xbf16, #tpu.memory_space<vmem>>, vector<8x128xbf16>,
    %c1 = arith.constant 1 : index
    %c0_27 = arith.constant 0 : index
    %c0_28 = arith.constant 0 : index
    %41 = vector.load %arg2[%c1, %c0_27, %c0_28] : memref<2x8x128xf32, #tpu.memory_space<vmem>>, vector<1x8x128xf32>
    %42 = vector.shape_cast %41 : vector<1x8x128xf32> to vector<8x128xf32>
    %43 = arith.truncf %42 : vector<8x128xf32> to vector<8x128xbf16>
    %c0_29 = arith.constant 0 : index
    %c128_30 = arith.constant 128 : index
    %44 = vector.load %arg11[%c0_29, %c128_30] : memref<8x256xbf16, #tpu.memory_space<vmem>>, vector<8x128xbf16>
    tpu.vector_store %arg11[%c0_29, %c128_30], %43 {strides = array<i32>} : memref<8x256xbf16, #tpu.memory_space<vmem>>, vector<8x128xbf16>,
    %c0_31 = arith.constant 0 : index
    %c0_32 = arith.constant 0 : index
    %45 = vector.load %arg11[%c0_31, %c0_32] : memref<8x256xbf16, #tpu.memory_space<vmem>>, vector<8x256xbf16>
    %c1_33 = arith.constant 1 : index
    %c0_34 = arith.constant 0 : index
    %c0_35 = arith.constant 0 : index
    %46 = vector.load %arg4[%c1_33, %c0_34, %c0_35] : memref<2x256x512xbf16, #tpu.memory_space<vmem>>, vector<1x256x512xbf16>
    %47 = vector.shape_cast %46 : vector<1x256x512xbf16> to vector<256x512xbf16>
    %cst_36 = arith.constant dense<0.000000e+00> : vector<8x512xf32>
    %48 = tpu.matmul %45, %47, %cst_36 {dimension_numbers = #tpu.dot_dimension_numbers<[1], [0], [0], [1], [0, 0, 1, 1], [], []>} : vector<8x256xbf16>, vector<256x512xbf16>, vector<8x512xf32> -> vector<8x512xf32>
    %c1_37 = arith.constant 1 : index
    %c0_38 = arith.constant 0 : index
    %c0_39 = arith.constant 0 : index
    %49 = vector.load %arg5[%c1_37, %c0_38, %c0_39] : memref<2x1x512xf32, #tpu.memory_space<vmem>>, vector<1x1x512xf32>
    %50 = vector.shape_cast %49 : vector<1x1x512xf32> to vector<1x512xf32>
    %51 = vector.broadcast %50 : vector<1x512xf32> to vector<8x512xf32>
    %52 = arith.addf %48, %51 : vector<8x512xf32>
    %53 = vector.extract_strided_slice %52 {offsets = [0, 0], sizes = [8, 384], strides = [1, 1]} : vector<8x512xf32> to vector<8x384xf32>
    %54 = arith.negf %53 : vector<8x384xf32>
    %55 = math.exp %54 : vector<8x384xf32>
    %cst_40 = arith.constant 1.000000e+00 : f32
    %56 = vector.broadcast %cst_40 : f32 to vector<8x384xf32>
    %57 = arith.addf %56, %55 : vector<8x384xf32>
    %58 = arith.divf %56, %57 : vector<8x384xf32>
    %59 = vector.extract_strided_slice %52 {offsets = [0, 384], sizes = [8, 128], strides = [1, 1]} : vector<8x512xf32> to vector<8x128xf32>
    %60 = math.tanh %59 : vector<8x128xf32>
    %61 = vector.extract_strided_slice %58 {offsets = [0, 0], sizes = [8, 128], strides = [1, 1]} : vector<8x384xf32> to vector<8x128xf32>
    %62 = vector.extract_strided_slice %58 {offsets = [0, 128], sizes = [8, 128], strides = [1, 1]} : vector<8x384xf32> to vector<8x128xf32>
    %63 = vector.extract_strided_slice %58 {offsets = [0, 256], sizes = [8, 128], strides = [1, 1]} : vector<8x384xf32> to vector<8x128xf32>
    %c1_41 = arith.constant 1 : index
    %c0_42 = arith.constant 0 : index
    %c0_43 = arith.constant 0 : index
    %64 = vector.load %arg3[%c1_41, %c0_42, %c0_43] : memref<2x8x128xf32, #tpu.memory_space<vmem>>, vector<1x8x128xf32>
    %65 = vector.shape_cast %64 : vector<1x8x128xf32> to vector<8x128xf32>
    %66 = arith.mulf %62, %65 : vector<8x128xf32>
    %67 = arith.mulf %61, %60 : vector<8x128xf32>
    %68 = arith.addf %66, %67 : vector<8x128xf32>
    %69 = math.tanh %68 : vector<8x128xf32>
    %70 = arith.mulf %63, %69 : vector<8x128xf32>
    %c1_44 = arith.constant 1 : index
    %c0_45 = arith.constant 0 : index
    %c0_46 = arith.constant 0 : index
    %71 = vector.load %arg8[%c1_44, %c0_45, %c0_46] : memref<2x8x128xf32, #tpu.memory_space<vmem>>, vector<1x8x128xf32>
    %72 = vector.shape_cast %71 : vector<1x8x128xf32> to vector<8x128xf32>
    %73 = vector.shape_cast %70 : vector<8x128xf32> to vector<1x8x128xf32>
    tpu.vector_store %arg8[%c1_44, %c0_45, %c0_46], %73 {strides = array<i32>} : memref<2x8x128xf32, #tpu.memory_space<vmem>>, vector<1x8x128xf32>,
    %c1_47 = arith.constant 1 : index
    %c0_48 = arith.constant 0 : index
    %c0_49 = arith.constant 0 : index
    %74 = vector.load %arg9[%c1_47, %c0_48, %c0_49] : memref<2x8x128xf32, #tpu.memory_space<vmem>>, vector<1x8x128xf32>
    %75 = vector.shape_cast %74 : vector<1x8x128xf32> to vector<8x128xf32>
    %76 = vector.shape_cast %68 : vector<8x128xf32> to vector<1x8x128xf32>
    tpu.vector_store %arg9[%c1_47, %c0_48, %c0_49], %76 {strides = array<i32>} : memref<2x8x128xf32, #tpu.memory_space<vmem>>, vector<1x8x128xf32>,
    %77 = arith.truncf %70 : vector<8x128xf32> to vector<8x128xbf16>
    %c0_50 = arith.constant 0 : index
    %c0_51 = arith.constant 0 : index
    %78 = vector.load %arg6[%c0_50, %c0_51] : memref<128x128xbf16, #tpu.memory_space<vmem>>, vector<128x128xbf16>
    %cst_52 = arith.constant dense<0.000000e+00> : vector<8x128xf32>
    %79 = tpu.matmul %77, %78, %cst_52 {dimension_numbers = #tpu.dot_dimension_numbers<[1], [0], [0], [1], [0, 0, 1, 1], [], []>} : vector<8x128xbf16>, vector<128x128xbf16>, vector<8x128xf32> -> vector<8x128xf32>
    %c0_53 = arith.constant 0 : index
    %c0_54 = arith.constant 0 : index
    %80 = vector.load %arg7[%c0_53, %c0_54] : memref<1x128xf32, #tpu.memory_space<vmem>>, vector<1x128xf32>
    %81 = vector.broadcast %80 : vector<1x128xf32> to vector<8x128xf32>
    %82 = arith.addf %79, %81 : vector<8x128xf32>
    %c0_55 = arith.constant 0 : index
    %c0_56 = arith.constant 0 : index
    %83 = vector.load %arg10[%c0_55, %c0_56] : memref<8x128xf32, #tpu.memory_space<vmem>>, vector<8x128xf32>
    tpu.vector_store %arg10[%c0_55, %c0_56], %82 {strides = array<i32>} : memref<8x128xf32, #tpu.memory_space<vmem>>, vector<8x128xf32>,
    return
  }
  func.func @transform_0(%arg0: i32) -> (i32, i32) {
    %c0_i32 = arith.constant 0 : i32
    %c0_i32_0 = arith.constant 0 : i32
    %c0_i32_1 = arith.constant 0 : i32
    return %c0_i32, %c0_i32_0 : i32, i32
  }
  func.func @transform_1(%arg0: i32) -> (i32, i32, i32) {
    %c0_i32 = arith.constant 0 : i32
    %c0_i32_0 = arith.constant 0 : i32
    %c0_i32_1 = arith.constant 0 : i32
    %c0_i32_2 = arith.constant 0 : i32
    return %c0_i32, %c0_i32_0, %c0_i32_1 : i32, i32, i32
  }
  func.func @transform_2(%arg0: i32) -> (i32, i32, i32) {
    %c0_i32 = arith.constant 0 : i32
    %c0_i32_0 = arith.constant 0 : i32
    %c0_i32_1 = arith.constant 0 : i32
    %c0_i32_2 = arith.constant 0 : i32
    return %c0_i32, %c0_i32_0, %c0_i32_1 : i32, i32, i32
  }
  func.func @transform_3(%arg0: i32) -> (i32, i32, i32) {
    %c0_i32 = arith.constant 0 : i32
    %c0_i32_0 = arith.constant 0 : i32
    %c0_i32_1 = arith.constant 0 : i32
    %c0_i32_2 = arith.constant 0 : i32
    return %c0_i32, %c0_i32_0, %c0_i32_1 : i32, i32, i32
  }
  func.func @transform_4(%arg0: i32) -> (i32, i32, i32) {
    %c0_i32 = arith.constant 0 : i32
    %c0_i32_0 = arith.constant 0 : i32
    %c0_i32_1 = arith.constant 0 : i32
    %c0_i32_2 = arith.constant 0 : i32
    return %c0_i32, %c0_i32_0, %c0_i32_1 : i32, i32, i32
  }
  func.func @transform_5(%arg0: i32) -> (i32, i32) {
    %c0_i32 = arith.constant 0 : i32
    %c0_i32_0 = arith.constant 0 : i32
    %c0_i32_1 = arith.constant 0 : i32
    return %c0_i32, %c0_i32_0 : i32, i32
  }
  func.func @transform_6(%arg0: i32) -> (i32, i32) {
    %c0_i32 = arith.constant 0 : i32
    %c0_i32_0 = arith.constant 0 : i32
    %c0_i32_1 = arith.constant 0 : i32
    return %c0_i32, %c0_i32_0 : i32, i32
  }
  func.func @transform_7(%arg0: i32) -> (i32, i32, i32) {
    %c0_i32 = arith.constant 0 : i32
    %c0_i32_0 = arith.constant 0 : i32
    %c0_i32_1 = arith.constant 0 : i32
    %c0_i32_2 = arith.constant 0 : i32
    return %c0_i32, %c0_i32_0, %c0_i32_1 : i32, i32, i32
  }
  func.func @transform_8(%arg0: i32) -> (i32, i32, i32) {
    %c0_i32 = arith.constant 0 : i32
    %c0_i32_0 = arith.constant 0 : i32
    %c0_i32_1 = arith.constant 0 : i32
    %c0_i32_2 = arith.constant 0 : i32
    return %c0_i32, %c0_i32_0, %c0_i32_1 : i32, i32, i32
  }
  func.func @transform_9(%arg0: i32) -> (i32, i32) {
    %c0_i32 = arith.constant 0 : i32
    %c0_i32_0 = arith.constant 0 : i32
    %c0_i32_1 = arith.constant 0 : i32
    return %c0_i32, %c0_i32_0 : i32, i32
  }
}

</mosaic_0001>

<llo_original>
// kernel: lstm_decoder_forward.1
$region0: #{lstm_decoder_forward.1}
  #allocation0 [shape = 'u32[]', space=smem, size = 0x4, offset = 0x4, fixed_abs, tag = 'smem constant byte address 0x4 - core index']
  #allocation1 [shape = 'u32[144,128]{1,0:T(1,128)}', space=vmem, size = 0x12000, scoped, tag = 'internal scratch']
  #allocation2 [shape = 'bf16[8,256]{1,0:T(8,128)(2,1)}', space=vmem, size = 0x1000, scoped, tag = 'scratch operand']
  %s0 = inlined_call_operand.vmem [shape: f32[8,128], index: 0, kind: input, shape index: {}]
  %s1 = inlined_call_operand.vmem [shape: f32[2,8,128], index: 1, kind: input, shape index: {}]
  %s2 = inlined_call_operand.vmem [shape: f32[2,8,128], index: 2, kind: input, shape index: {}]
  %s3 = inlined_call_operand.hbm [shape: bf16[2,256,512], index: 3, kind: input, shape index: {}]
  %s4 = inlined_call_operand.vmem [shape: f32[2,1,512], index: 4, kind: input, shape index: {}]
  %s5 = inlined_call_operand.hbm [shape: bf16[128,128], index: 5, kind: input, shape index: {}]
  %s6 = inlined_call_operand.vmem [shape: f32[1,128], index: 6, kind: input, shape index: {}]
  %s7 = inlined_call_operand.vmem [shape: f32[2,8,128], index: 7, kind: output, shape index: {0}]
  %s8 = inlined_call_operand.vmem [shape: f32[2,8,128], index: 8, kind: output, shape index: {1}]
  %s9 = inlined_call_operand.vmem [shape: f32[8,128], index: 9, kind: output, shape index: {2}]
  %10 = xla_tuple %s7, %s8, %s9
  %s11 = sld [smem:[#allocation0]]
  $region62: #{lstm_decoder_forward.1} parent=0
    _
  %s13 = ssub.s32 1, %s11
  %s14 = scalar_select 0, %s13, %s11
  $region1: #{lstm_decoder_forward.1} parent=0
    #allocation3 [shape = 'u8[524288]{0}', space=vmem, size = 0x80000, scoped, tag = 'input window, operand 3, single buffered']
    #allocation4 [shape = 's32[1]{0}', space=sflag, size = 0x4, scoped, tag = 'scoped memory for lstm_decoder_forward.1']
    #allocation5 [shape = 'u8[32768]{0}', space=vmem, size = 0x8000, scoped, tag = 'input window, operand 5, single buffered']
    #allocation6 [shape = 's32[1]{0}', space=sflag, size = 0x4, scoped, tag = 'scoped memory for lstm_decoder_forward.1']
    %15 = vsyncpa [#allocation4], 0
    %16 = vsyncpa [#allocation6], 0
    // Predicated region
    $region2: #{lstm_decoder_forward.1} parent=1 // pred_check
      _
    $region3: #{lstm_decoder_forward.1} parent=1 // pred_check_branch
      %18 = sbr.rel (0) target = $region5
    $region4: #{lstm_decoder_forward.1} parent=1 // pred_region
      _
    $region5: #{lstm_decoder_forward.1} parent=1 // pred_fallthru
      _
    // Predicated region
    $region6: #{lstm_decoder_forward.1} parent=1 // pred_check
      _
    $region7: #{lstm_decoder_forward.1} parent=1 // pred_check_branch
      %20 = sbr.rel (0) target = $region9
    $region8: #{lstm_decoder_forward.1} parent=1 // pred_region
      _
    $region9: #{lstm_decoder_forward.1} parent=1 // pred_fallthru
      _
    // Predicated region
    $region10: #{lstm_decoder_forward.1} parent=1 // pred_check
      _
    $region11: #{lstm_decoder_forward.1} parent=1 // pred_check_branch
      %22 = sbr.rel (0) target = $region13
    $region12: #{lstm_decoder_forward.1} parent=1 // pred_region
      _
    $region13: #{lstm_decoder_forward.1} parent=1 // pred_fallthru
      _
    // Predicated region
    $region14: #{lstm_decoder_forward.1} parent=1 // pred_check
      _
    $region15: #{lstm_decoder_forward.1} parent=1 // pred_check_branch
      %24 = sbr.rel (0) target = $region17
    $region16: #{lstm_decoder_forward.1} parent=1 // pred_region
      %s26 = ssub.s32 16384, 16384
      %27 = vsyncadd [#allocation4], %s26
      %s28 = sshll.u32 [#allocation3], 4
      %s29 = int_to_ptr.vmem [resolvable:$true] %s28
      %34 = dma.hbm_to_vmem [thread:$0]  %s3, 16384, %s29, [#allocation4], 256, 256, 16
    $region17: #{lstm_decoder_forward.1} parent=1 // pred_fallthru
      _
    // Predicated region
    $region18: #{lstm_decoder_forward.1} parent=1 // pred_check
      _
    $region19: #{lstm_decoder_forward.1} parent=1 // pred_check_branch
      %36 = sbr.rel (0) target = $region21
    $region20: #{lstm_decoder_forward.1} parent=1 // pred_region
      _
    $region21: #{lstm_decoder_forward.1} parent=1 // pred_fallthru
      _
    // Predicated region
    $region22: #{lstm_decoder_forward.1} parent=1 // pred_check
      _
    $region23: #{lstm_decoder_forward.1} parent=1 // pred_check_branch
      %38 = sbr.rel (0) target = $region25
    $region24: #{lstm_decoder_forward.1} parent=1 // pred_region
      %s40 = ssub.s32 1024, 1024
      %41 = vsyncadd [#allocation6], %s40
      %s42 = sshll.u32 [#allocation5], 4
      %s43 = int_to_ptr.vmem [resolvable:$true] %s42
      %48 = dma.hbm_to_vmem [thread:$0]  %s5, 1024, %s43, [#allocation6], 64, 64, 4
    $region25: #{lstm_decoder_forward.1} parent=1 // pred_fallthru
      _
    // Predicated region
    $region26: #{lstm_decoder_forward.1} parent=1 // pred_check
      _
    $region27: #{lstm_decoder_forward.1} parent=1 // pred_check_branch
      %50 = sbr.rel (0) target = $region29
    $region28: #{lstm_decoder_forward.1} parent=1 // pred_region
      _
    $region29: #{lstm_decoder_forward.1} parent=1 // pred_fallthru
      _
    // Predicated region
    $region30: #{lstm_decoder_forward.1} parent=1 // pred_check
      _
    $region31: #{lstm_decoder_forward.1} parent=1 // pred_check_branch
      %52 = sbr.rel (0) target = $region33
    $region32: #{lstm_decoder_forward.1} parent=1 // pred_region
      %53 = dma.done [#allocation4], 16384
    $region33: #{lstm_decoder_forward.1} parent=1 // pred_fallthru
      _
    // Predicated region
    $region34: #{lstm_decoder_forward.1} parent=1 // pred_check
      _
    $region35: #{lstm_decoder_forward.1} parent=1 // pred_check_branch
      %55 = sbr.rel (0) target = $region37
    $region36: #{lstm_decoder_forward.1} parent=1 // pred_region
      %56 = dma.done [#allocation6], 1024
    $region37: #{lstm_decoder_forward.1} parent=1 // pred_fallthru
      _
    %v58 = vld [vmem:[%s0] sm:$0xff]
    %v59 = vpack.c.bf16 %v58, %v58
    %60 = vst [vmem:[#allocation2] sm:$0xf] %v59
    %v61 = vld [vmem:[%s1] sm:$0xff]
    %v62 = vpack.c.bf16 %v61, %v61
    %63 = vst [vmem:[#allocation2 + $0x4] sm:$0xf] %v62
    %v64 = vld [vmem:[#allocation2] sm:$0xff]
    %v65 = vld [vmem:[#allocation3] sm:$0xff]
    %v66 = vld [vmem:[#allocation3 + $0x8] sm:$0xff]
    %v67 = vld [vmem:[#allocation3 + $0x10] sm:$0xff]
    %v68 = vld [vmem:[#allocation3 + $0x18] sm:$0xff]
    %v69 = vld [vmem:[#allocation3 + $0x20] sm:$0xff]
    %v70 = vld [vmem:[#allocation3 + $0x28] sm:$0xff]
    %v71 = vld [vmem:[#allocation3 + $0x30] sm:$0xff]
    %v72 = vld [vmem:[#allocation3 + $0x38] sm:$0xff]
    %v73 = vld [vmem:[#allocation3 + $0x40] sm:$0xff]
    %v74 = vld [vmem:[#allocation3 + $0x48] sm:$0xff]
    %v75 = vld [vmem:[#allocation3 + $0x50] sm:$0xff]
    %v76 = vld [vmem:[#allocation3 + $0x58] sm:$0xff]
    %v77 = vld [vmem:[#allocation3 + $0x60] sm:$0xff]
    %v78 = vld [vmem:[#allocation3 + $0x68] sm:$0xff]
    %v79 = vld [vmem:[#allocation3 + $0x70] sm:$0xff]
    %v80 = vld [vmem:[#allocation3 + $0x78] sm:$0xff]
    %v81 = vld [vmem:[#allocation3 + $0x80] sm:$0xff]
    %v82 = vld [vmem:[#allocation3 + $0x88] sm:$0xff]
    %v83 = vld [vmem:[#allocation3 + $0x90] sm:$0xff]
    %v84 = vld [vmem:[#allocation3 + $0x98] sm:$0xff]
    %v85 = vld [vmem:[#allocation3 + $0xa0] sm:$0xff]
    %v86 = vld [vmem:[#allocation3 + $0xa8] sm:$0xff]
    %v87 = vld [vmem:[#allocation3 + $0xb0] sm:$0xff]
    %v88 = vld [vmem:[#allocation3 + $0xb8] sm:$0xff]
    %v89 = vld [vmem:[#allocation3 + $0xc0] sm:$0xff]
    %v90 = vld [vmem:[#allocation3 + $0xc8] sm:$0xff]
    %v91 = vld [vmem:[#allocation3 + $0xd0] sm:$0xff]
    %v92 = vld [vmem:[#allocation3 + $0xd8] sm:$0xff]
    %v93 = vld [vmem:[#allocation3 + $0xe0] sm:$0xff]
    %v94 = vld [vmem:[#allocation3 + $0xe8] sm:$0xff]
    %v95 = vld [vmem:[#allocation3 + $0xf0] sm:$0xff]
    %v96 = vld [vmem:[#allocation3 + $0xf8] sm:$0xff]
    %v97 = vld [vmem:[#allocation3 + $0x100] sm:$0xff]
    %v98 = vld [vmem:[#allocation3 + $0x108] sm:$0xff]
    %v99 = vld [vmem:[#allocation3 + $0x110] sm:$0xff]
    %v100 = vld [vmem:[#allocation3 + $0x118] sm:$0xff]
    %v101 = vld [vmem:[#allocation3 + $0x120] sm:$0xff]
    %v102 = vld [vmem:[#allocation3 + $0x128] sm:$0xff]
    %v103 = vld [vmem:[#allocation3 + $0x130] sm:$0xff]
    %v104 = vld [vmem:[#allocation3 + $0x138] sm:$0xff]
    %v105 = vld [vmem:[#allocation3 + $0x140] sm:$0xff]
    %v106 = vld [vmem:[#allocation3 + $0x148] sm:$0xff]
    %v107 = vld [vmem:[#allocation3 + $0x150] sm:$0xff]
    %v108 = vld [vmem:[#allocation3 + $0x158] sm:$0xff]
    %v109 = vld [vmem:[#allocation3 + $0x160] sm:$0xff]
    %v110 = vld [vmem:[#allocation3 + $0x168] sm:$0xff]
    %v111 = vld [vmem:[#allocation3 + $0x170] sm:$0xff]
    %v112 = vld [vmem:[#allocation3 + $0x178] sm:$0xff]
    %v113 = vld [vmem:[#allocation3 + $0x180] sm:$0xff]
    %v114 = vld [vmem:[#allocation3 + $0x188] sm:$0xff]
    %v115 = vld [vmem:[#allocation3 + $0x190] sm:$0xff]
    %v116 = vld [vmem:[#allocation3 + $0x198] sm:$0xff]
    %v117 = vld [vmem:[#allocation3 + $0x1a0] sm:$0xff]
    %v118 = vld [vmem:[#allocation3 + $0x1a8] sm:$0xff]
    %v119 = vld [vmem:[#allocation3 + $0x1b0] sm:$0xff]
    %v120 = vld [vmem:[#allocation3 + $0x1b8] sm:$0xff]
    %v121 = vld [vmem:[#allocation3 + $0x1c0] sm:$0xff]
    %v122 = vld [vmem:[#allocation3 + $0x1c8] sm:$0xff]
    %v123 = vld [vmem:[#allocation3 + $0x1d0] sm:$0xff]
    %v124 = vld [vmem:[#allocation3 + $0x1d8] sm:$0xff]
    %v125 = vld [vmem:[#allocation3 + $0x1e0] sm:$0xff]
    %v126 = vld [vmem:[#allocation3 + $0x1e8] sm:$0xff]
    %v127 = vld [vmem:[#allocation3 + $0x1f0] sm:$0xff]
    %v128 = vld [vmem:[#allocation3 + $0x1f8] sm:$0xff]
    %v129 = vld [vmem:[%s4] sm:$0xf]
    %v131 = vlaneseq
    %v132 = vshrl.u32 %v131, 7
    %v133 = vsub.s32 0, %v132
    %v134 = vrot.slane %v129, %v133
    %v135 = vlaneseq
    %v136 = vshrl.u32 %v135, 7
    %v137 = vsub.s32 1, %v136
    %v138 = vrot.slane %v129, %v137
    %v139 = vlaneseq
    %v140 = vshrl.u32 %v139, 7
    %v141 = vsub.s32 2, %v140
    %v142 = vrot.slane %v129, %v141
    %v143 = vlaneseq
    %v144 = vshrl.u32 %v143, 7
    %v145 = vsub.s32 3, %v144
    %v146 = vrot.slane %v129, %v145
    %v152 = vunpack.c.l.b16 %v64
    %v153 = vunpack.c.h.b16 %v64
    %v154 = vpack.c.b16 %v152, %v152
    %v155 = vpack.c.b16 %v153, %v153
    %v222 = vunpack.c.l.b16 %v65
    %v223 = vunpack.c.h.b16 %v65
    %v224 = vunpack.c.l.b16 %v66
    %v225 = vunpack.c.h.b16 %v66
    %v226 = vunpack.c.l.b16 %v67
    %v227 = vunpack.c.h.b16 %v67
    %v228 = vunpack.c.l.b16 %v68
    %v229 = vunpack.c.h.b16 %v68
    %v230 = vunpack.c.l.b16 %v69
    %v231 = vunpack.c.h.b16 %v69
    %v232 = vunpack.c.l.b16 %v70
    %v233 = vunpack.c.h.b16 %v70
    %v234 = vunpack.c.l.b16 %v71
    %v235 = vunpack.c.h.b16 %v71
    %v236 = vunpack.c.l.b16 %v72
    %v237 = vunpack.c.h.b16 %v72
    %v238 = vunpack.c.l.b16 %v73
    %v239 = vunpack.c.h.b16 %v73
    %v240 = vunpack.c.l.b16 %v74
    %v241 = vunpack.c.h.b16 %v74
    %v242 = vunpack.c.l.b16 %v75
    %v243 = vunpack.c.h.b16 %v75
    %v244 = vunpack.c.l.b16 %v76
    %v245 = vunpack.c.h.b16 %v76
    %v246 = vunpack.c.l.b16 %v77
    %v247 = vunpack.c.h.b16 %v77
    %v248 = vunpack.c.l.b16 %v78
    %v249 = vunpack.c.h.b16 %v78
    %v250 = vunpack.c.l.b16 %v79
    %v251 = vunpack.c.h.b16 %v79
    %v252 = vunpack.c.l.b16 %v80
    %v253 = vunpack.c.h.b16 %v80
    %v254 = vunpack.c.l.b16 %v81
    %v255 = vunpack.c.h.b16 %v81
    %v256 = vunpack.c.l.b16 %v82
    %v257 = vunpack.c.h.b16 %v82
    %v258 = vunpack.c.l.b16 %v83
    %v259 = vunpack.c.h.b16 %v83
    %v260 = vunpack.c.l.b16 %v84
    %v261 = vunpack.c.h.b16 %v84
    %v262 = vunpack.c.l.b16 %v85
    %v263 = vunpack.c.h.b16 %v85
    %v264 = vunpack.c.l.b16 %v86
    %v265 = vunpack.c.h.b16 %v86
    %v266 = vunpack.c.l.b16 %v87
    %v267 = vunpack.c.h.b16 %v87
    %v268 = vunpack.c.l.b16 %v88
    %v269 = vunpack.c.h.b16 %v88
    %v270 = vunpack.c.l.b16 %v89
    %v271 = vunpack.c.h.b16 %v89
    %v272 = vunpack.c.l.b16 %v90
    %v273 = vunpack.c.h.b16 %v90
    %v274 = vunpack.c.l.b16 %v91
    %v275 = vunpack.c.h.b16 %v91
    %v276 = vunpack.c.l.b16 %v92
    %v277 = vunpack.c.h.b16 %v92
    %v278 = vunpack.c.l.b16 %v93
    %v279 = vunpack.c.h.b16 %v93
    %v280 = vunpack.c.l.b16 %v94
    %v281 = vunpack.c.h.b16 %v94
    %v282 = vunpack.c.l.b16 %v95
    %v283 = vunpack.c.h.b16 %v95
    %v284 = vunpack.c.l.b16 %v96
    %v285 = vunpack.c.h.b16 %v96
    %v286 = vunpack.c.l.b16 %v97
    %v287 = vunpack.c.h.b16 %v97
    %v288 = vunpack.c.l.b16 %v98
    %v289 = vunpack.c.h.b16 %v98
    %v290 = vunpack.c.l.b16 %v99
    %v291 = vunpack.c.h.b16 %v99
    %v292 = vunpack.c.l.b16 %v100
    %v293 = vunpack.c.h.b16 %v100
    %v294 = vunpack.c.l.b16 %v101
    %v295 = vunpack.c.h.b16 %v101
    %v296 = vunpack.c.l.b16 %v102
    %v297 = vunpack.c.h.b16 %v102
    %v298 = vunpack.c.l.b16 %v103
    %v299 = vunpack.c.h.b16 %v103
    %v300 = vunpack.c.l.b16 %v104
    %v301 = vunpack.c.h.b16 %v104
    %v302 = vunpack.c.l.b16 %v105
    %v303 = vunpack.c.h.b16 %v105
    %v304 = vunpack.c.l.b16 %v106
    %v305 = vunpack.c.h.b16 %v106
    %v306 = vunpack.c.l.b16 %v107
    %v307 = vunpack.c.h.b16 %v107
    %v308 = vunpack.c.l.b16 %v108
    %v309 = vunpack.c.h.b16 %v108
    %v310 = vunpack.c.l.b16 %v109
    %v311 = vunpack.c.h.b16 %v109
    %v312 = vunpack.c.l.b16 %v110
    %v313 = vunpack.c.h.b16 %v110
    %v314 = vunpack.c.l.b16 %v111
    %v315 = vunpack.c.h.b16 %v111
    %v316 = vunpack.c.l.b16 %v112
    %v317 = vunpack.c.h.b16 %v112
    %v318 = vunpack.c.l.b16 %v113
    %v319 = vunpack.c.h.b16 %v113
    %v320 = vunpack.c.l.b16 %v114
    %v321 = vunpack.c.h.b16 %v114
    %v322 = vunpack.c.l.b16 %v115
    %v323 = vunpack.c.h.b16 %v115
    %v324 = vunpack.c.l.b16 %v116
    %v325 = vunpack.c.h.b16 %v116
    %v326 = vunpack.c.l.b16 %v117
    %v327 = vunpack.c.h.b16 %v117
    %v328 = vunpack.c.l.b16 %v118
    %v329 = vunpack.c.h.b16 %v118
    %v330 = vunpack.c.l.b16 %v119
    %v331 = vunpack.c.h.b16 %v119
    %v332 = vunpack.c.l.b16 %v120
    %v333 = vunpack.c.h.b16 %v120
    %v334 = vunpack.c.l.b16 %v121
    %v335 = vunpack.c.h.b16 %v121
    %v336 = vunpack.c.l.b16 %v122
    %v337 = vunpack.c.h.b16 %v122
    %v338 = vunpack.c.l.b16 %v123
    %v339 = vunpack.c.h.b16 %v123
    %v340 = vunpack.c.l.b16 %v124
    %v341 = vunpack.c.h.b16 %v124
    %v342 = vunpack.c.l.b16 %v125
    %v343 = vunpack.c.h.b16 %v125
    %v344 = vunpack.c.l.b16 %v126
    %v345 = vunpack.c.h.b16 %v126
    %v346 = vunpack.c.l.b16 %v127
    %v347 = vunpack.c.h.b16 %v127
    %v348 = vunpack.c.l.b16 %v128
    %v349 = vunpack.c.h.b16 %v128
    %v350 = vpack.c.b16 %v226, %v222
    %v351 = vpack.c.b16 %v227, %v223
    %v352 = vpack.c.b16 %v228, %v224
    %v353 = vpack.c.b16 %v229, %v225
    %v354 = vpack.c.b16 %v234, %v230
    %v355 = vpack.c.b16 %v235, %v231
    %v356 = vpack.c.b16 %v236, %v232
    %v357 = vpack.c.b16 %v237, %v233
    %v358 = vpack.c.b16 %v242, %v238
    %v359 = vpack.c.b16 %v243, %v239
    %v360 = vpack.c.b16 %v244, %v240
    %v361 = vpack.c.b16 %v245, %v241
    %v362 = vpack.c.b16 %v250, %v246
    %v363 = vpack.c.b16 %v251, %v247
    %v364 = vpack.c.b16 %v252, %v248
    %v365 = vpack.c.b16 %v253, %v249
    %v366 = vpack.c.b16 %v258, %v254
    %v367 = vpack.c.b16 %v259, %v255
    %v368 = vpack.c.b16 %v260, %v256
    %v369 = vpack.c.b16 %v261, %v257
    %v370 = vpack.c.b16 %v266, %v262
    %v371 = vpack.c.b16 %v267, %v263
    %v372 = vpack.c.b16 %v268, %v264
    %v373 = vpack.c.b16 %v269, %v265
    %v374 = vpack.c.b16 %v274, %v270
    %v375 = vpack.c.b16 %v275, %v271
    %v376 = vpack.c.b16 %v276, %v272
    %v377 = vpack.c.b16 %v277, %v273
    %v378 = vpack.c.b16 %v282, %v278
    %v379 = vpack.c.b16 %v283, %v279
    %v380 = vpack.c.b16 %v284, %v280
    %v381 = vpack.c.b16 %v285, %v281
    %v382 = vpack.c.b16 %v290, %v286
    %v383 = vpack.c.b16 %v291, %v287
    %v384 = vpack.c.b16 %v292, %v288
    %v385 = vpack.c.b16 %v293, %v289
    %v386 = vpack.c.b16 %v298, %v294
    %v387 = vpack.c.b16 %v299, %v295
    %v388 = vpack.c.b16 %v300, %v296
    %v389 = vpack.c.b16 %v301, %v297
    %v390 = vpack.c.b16 %v306, %v302
    %v391 = vpack.c.b16 %v307, %v303
    %v392 = vpack.c.b16 %v308, %v304
    %v393 = vpack.c.b16 %v309, %v305
    %v394 = vpack.c.b16 %v314, %v310
    %v395 = vpack.c.b16 %v315, %v311
    %v396 = vpack.c.b16 %v316, %v312
    %v397 = vpack.c.b16 %v317, %v313
    %v398 = vpack.c.b16 %v322, %v318
    %v399 = vpack.c.b16 %v323, %v319
    %v400 = vpack.c.b16 %v324, %v320
    %v401 = vpack.c.b16 %v325, %v321
    %v402 = vpack.c.b16 %v330, %v326
    %v403 = vpack.c.b16 %v331, %v327
    %v404 = vpack.c.b16 %v332, %v328
    %v405 = vpack.c.b16 %v333, %v329
    %v406 = vpack.c.b16 %v338, %v334
    %v407 = vpack.c.b16 %v339, %v335
    %v408 = vpack.c.b16 %v340, %v336
    %v409 = vpack.c.b16 %v341, %v337
    %v410 = vpack.c.b16 %v346, %v342
    %v411 = vpack.c.b16 %v347, %v343
    %v412 = vpack.c.b16 %v348, %v344
    %v413 = vpack.c.b16 %v349, %v345
    %478 = vmatprep.subr.bf16.mxu0 %v379
    %479 = vmatpush1.bf16.msra.mxu0 %v378
    %480 = vmatprep.subr.bf16.mxu0 %v375
    %481 = vmatpush1.bf16.msra.mxu0 %v374
    %482 = vmatprep.subr.bf16.mxu0 %v371
    %483 = vmatpush1.bf16.msra.mxu0 %v370
    %484 = vmatprep.subr.bf16.mxu0 %v367
    %485 = vmatpush1.bf16.msra.mxu0 %v366
    %486 = vmatprep.subr.bf16.mxu0 %v363
    %487 = vmatpush1.bf16.msra.mxu0 %v362
    %488 = vmatprep.subr.bf16.mxu0 %v359
    %489 = vmatpush1.bf16.msra.mxu0 %v358
    %490 = vmatprep.subr.bf16.mxu0 %v355
    %491 = vmatpush1.bf16.msra.mxu0 %v354
    %492 = vmatprep.subr.bf16.mxu0 %v351
    %493 = vmatpush1.bf16.msra.mxu0 %v350
    %494 = vmatprep.subr.bf16.mxu0 %v411
    %495 = vmatpush2.bf16.msra.mxu0 %v410
    %496 = vmatprep.subr.bf16.mxu0 %v407
    %497 = vmatpush2.bf16.msra.mxu0 %v406
    %498 = vmatprep.subr.bf16.mxu0 %v403
    %499 = vmatpush2.bf16.msra.mxu0 %v402
    %500 = vmatprep.subr.bf16.mxu0 %v399
    %501 = vmatpush2.bf16.msra.mxu0 %v398
    %502 = vmatprep.subr.bf16.mxu0 %v395
    %503 = vmatpush2.bf16.msra.mxu0 %v394
    %504 = vmatprep.subr.bf16.mxu0 %v391
    %505 = vmatpush2.bf16.msra.mxu0 %v390
    %506 = vmatprep.subr.bf16.mxu0 %v387
    %507 = vmatpush2.bf16.msra.mxu0 %v386
    %508 = vmatprep.subr.bf16.mxu0 %v383
    %509 = vmatpush2.bf16.msra.mxu0 %v382
    %510 = vmatprep.mubr.bf16.mxu0 %v155
    %511 = vmatmul.mubr.bf16.gmra.mxu0 %v154
    %v512 = vpop.f32.mrf.mxu0
    %v513 = vadd.f32 %v134, %v512
    %v514 = vpop.f32.mrf.mxu0
    %v515 = vadd.f32 %v138, %v514
    %v516 = vpop.f32.mrf.mxu0
    %v517 = vpop.f32.mrf.mxu0
    %518 = vdwg.mxu0
    %519 = vmatprep.subr.bf16.mxu0 %v381
    %520 = vmatpush1.bf16.msra.mxu0 %v380
    %521 = vmatprep.subr.bf16.mxu0 %v377
    %522 = vmatpush1.bf16.msra.mxu0 %v376
    %523 = vmatprep.subr.bf16.mxu0 %v373
    %524 = vmatpush1.bf16.msra.mxu0 %v372
    %525 = vmatprep.subr.bf16.mxu0 %v369
    %526 = vmatpush1.bf16.msra.mxu0 %v368
    %527 = vmatprep.subr.bf16.mxu0 %v365
    %528 = vmatpush1.bf16.msra.mxu0 %v364
    %529 = vmatprep.subr.bf16.mxu0 %v361
    %530 = vmatpush1.bf16.msra.mxu0 %v360
    %531 = vmatprep.subr.bf16.mxu0 %v357
    %532 = vmatpush1.bf16.msra.mxu0 %v356
    %533 = vmatprep.subr.bf16.mxu0 %v353
    %534 = vmatpush1.bf16.msra.mxu0 %v352
    %535 = vmatprep.subr.bf16.mxu0 %v413
    %536 = vmatpush2.bf16.msra.mxu0 %v412
    %537 = vmatprep.subr.bf16.mxu0 %v409
    %538 = vmatpush2.bf16.msra.mxu0 %v408
    %539 = vmatprep.subr.bf16.mxu0 %v405
    %540 = vmatpush2.bf16.msra.mxu0 %v404
    %541 = vmatprep.subr.bf16.mxu0 %v401
    %542 = vmatpush2.bf16.msra.mxu0 %v400
    %543 = vmatprep.subr.bf16.mxu0 %v397
    %544 = vmatpush2.bf16.msra.mxu0 %v396
    %545 = vmatprep.subr.bf16.mxu0 %v393
    %546 = vmatpush2.bf16.msra.mxu0 %v392
    %547 = vmatprep.subr.bf16.mxu0 %v389
    %548 = vmatpush2.bf16.msra.mxu0 %v388
    %549 = vmatprep.subr.bf16.mxu0 %v385
    %550 = vmatpush2.bf16.msra.mxu0 %v384
    %551 = vmatprep.mubr.bf16.mxu0 %v155
    %552 = vmatmul.mubr.bf16.gmra.mxu0 %v154
    %v553 = vpop.f32.mrf.mxu0
    %v554 = vadd.f32 %v142, %v553
    %v555 = vpop.f32.mrf.mxu0
    %v556 = vadd.f32 %v146, %v555
    %v557 = vpop.f32.mrf.mxu0
    %v558 = vpop.f32.mrf.mxu0
    %559 = vdwg.mxu0
    %v560 = vxor.u32 %v513, 2147483648
    %v561 = vxor.u32 %v515, 2147483648
    %v562 = vxor.u32 %v554, 2147483648
    %v563 = vmul.f32 %v560, 1.442695
    %v564 = vpow.pop %v563
    %v565 = vmul.f32 %v561, 1.442695
    %v566 = vpow.pop %v565
    %v567 = vmul.f32 %v562, 1.442695
    %v568 = vpow.pop %v567
    %v569 = vadd.f32 %v564, 1.0
    %v570 = vadd.f32 %v566, 1.0
    %v571 = vadd.f32 %v568, 1.0
    %v572 = vrcp.pop %v569
    %v573 = vmul.f32 1.0, %v572
    %v574 = vrcp.pop %v570
    %v575 = vmul.f32 1.0, %v574
    %v576 = vrcp.pop %v571
    %v577 = vmul.f32 1.0, %v576
    %v578 = vtanh.pop %v556
    %v579 = vld [vmem:[%s2] sm:$0xff]
    %v580 = vmul.f32 %v575, %v579
    %v581 = vmul.f32 %v573, %v578
    %v582 = vadd.f32 %v580, %v581
    %v583 = vtanh.pop %v582
    %v584 = vmul.f32 %v577, %v583
    %585 = vst [vmem:[%s7] sm:$0xff] %v584
    %586 = vst [vmem:[%s8] sm:$0xff] %v582
    %v587 = vpack.c.bf16 %v584, %v584
    %588 = vst [vmem:[#allocation2] sm:$0xf] %v587
    %s589 = scalar_lea.vmem %s1, 8
    %v590 = vld [vmem:[%s589] sm:$0xff]
    %v591 = vpack.c.bf16 %v590, %v590
    %592 = vst [vmem:[#allocation2 + $0x4] sm:$0xf] %v591
    %v593 = vld [vmem:[#allocation2] sm:$0xff]
    %s594 = scalar_lea.vmem [#allocation3], 512
    %v595 = vld [vmem:[%s594] sm:$0xff]
    %v596 = vld [vmem:[%s594 + $0x8] sm:$0xff]
    %v597 = vld [vmem:[%s594 + $0x10] sm:$0xff]
    %v598 = vld [vmem:[%s594 + $0x18] sm:$0xff]
    %v599 = vld [vmem:[%s594 + $0x20] sm:$0xff]
    %v600 = vld [vmem:[%s594 + $0x28] sm:$0xff]
    %v601 = vld [vmem:[%s594 + $0x30] sm:$0xff]
    %v602 = vld [vmem:[%s594 + $0x38] sm:$0xff]
    %v603 = vld [vmem:[%s594 + $0x40] sm:$0xff]
    %v604 = vld [vmem:[%s594 + $0x48] sm:$0xff]
    %v605 = vld [vmem:[%s594 + $0x50] sm:$0xff]
    %v606 = vld [vmem:[%s594 + $0x58] sm:$0xff]
    %v607 = vld [vmem:[%s594 + $0x60] sm:$0xff]
    %v608 = vld [vmem:[%s594 + $0x68] sm:$0xff]
    %v609 = vld [vmem:[%s594 + $0x70] sm:$0xff]
    %v610 = vld [vmem:[%s594 + $0x78] sm:$0xff]
    %v611 = vld [vmem:[%s594 + $0x80] sm:$0xff]
    %v612 = vld [vmem:[%s594 + $0x88] sm:$0xff]
    %v613 = vld [vmem:[%s594 + $0x90] sm:$0xff]
    %v614 = vld [vmem:[%s594 + $0x98] sm:$0xff]
    %v615 = vld [vmem:[%s594 + $0xa0] sm:$0xff]
    %v616 = vld [vmem:[%s594 + $0xa8] sm:$0xff]
    %v617 = vld [vmem:[%s594 + $0xb0] sm:$0xff]
    %v618 = vld [vmem:[%s594 + $0xb8] sm:$0xff]
    %v619 = vld [vmem:[%s594 + $0xc0] sm:$0xff]
    %v620 = vld [vmem:[%s594 + $0xc8] sm:$0xff]
    %v621 = vld [vmem:[%s594 + $0xd0] sm:$0xff]
    %v622 = vld [vmem:[%s594 + $0xd8] sm:$0xff]
    %v623 = vld [vmem:[%s594 + $0xe0] sm:$0xff]
    %v624 = vld [vmem:[%s594 + $0xe8] sm:$0xff]
    %v625 = vld [vmem:[%s594 + $0xf0] sm:$0xff]
    %v626 = vld [vmem:[%s594 + $0xf8] sm:$0xff]
    %v627 = vld [vmem:[%s594 + $0x100] sm:$0xff]
    %v628 = vld [vmem:[%s594 + $0x108] sm:$0xff]
    %v629 = vld [vmem:[%s594 + $0x110] sm:$0xff]
    %v630 = vld [vmem:[%s594 + $0x118] sm:$0xff]
    %v631 = vld [vmem:[%s594 + $0x120] sm:$0xff]
    %v632 = vld [vmem:[%s594 + $0x128] sm:$0xff]
    %v633 = vld [vmem:[%s594 + $0x130] sm:$0xff]
    %v634 = vld [vmem:[%s594 + $0x138] sm:$0xff]
    %v635 = vld [vmem:[%s594 + $0x140] sm:$0xff]
    %v636 = vld [vmem:[%s594 + $0x148] sm:$0xff]
    %v637 = vld [vmem:[%s594 + $0x150] sm:$0xff]
    %v638 = vld [vmem:[%s594 + $0x158] sm:$0xff]
    %v639 = vld [vmem:[%s594 + $0x160] sm:$0xff]
    %v640 = vld [vmem:[%s594 + $0x168] sm:$0xff]
    %v641 = vld [vmem:[%s594 + $0x170] sm:$0xff]
    %v642 = vld [vmem:[%s594 + $0x178] sm:$0xff]
    %v643 = vld [vmem:[%s594 + $0x180] sm:$0xff]
    %v644 = vld [vmem:[%s594 + $0x188] sm:$0xff]
    %v645 = vld [vmem:[%s594 + $0x190] sm:$0xff]
    %v646 = vld [vmem:[%s594 + $0x198] sm:$0xff]
    %v647 = vld [vmem:[%s594 + $0x1a0] sm:$0xff]
    %v648 = vld [vmem:[%s594 + $0x1a8] sm:$0xff]
    %v649 = vld [vmem:[%s594 + $0x1b0] sm:$0xff]
    %v650 = vld [vmem:[%s594 + $0x1b8] sm:$0xff]
    %v651 = vld [vmem:[%s594 + $0x1c0] sm:$0xff]
    %v652 = vld [vmem:[%s594 + $0x1c8] sm:$0xff]
    %v653 = vld [vmem:[%s594 + $0x1d0] sm:$0xff]
    %v654 = vld [vmem:[%s594 + $0x1d8] sm:$0xff]
    %v655 = vld [vmem:[%s594 + $0x1e0] sm:$0xff]
    %v656 = vld [vmem:[%s594 + $0x1e8] sm:$0xff]
    %v657 = vld [vmem:[%s594 + $0x1f0] sm:$0xff]
    %v658 = vld [vmem:[%s594 + $0x1f8] sm:$0xff]
    %s659 = scalar_lea.vmem %s4, 4
    %v660 = vld [vmem:[%s659] sm:$0xf]
    %v662 = vlaneseq
    %v663 = vshrl.u32 %v662, 7
    %v664 = vsub.s32 0, %v663
    %v665 = vrot.slane %v660, %v664
    %v666 = vlaneseq
    %v667 = vshrl.u32 %v666, 7
    %v668 = vsub.s32 1, %v667
    %v669 = vrot.slane %v660, %v668
    %v670 = vlaneseq
    %v671 = vshrl.u32 %v670, 7
    %v672 = vsub.s32 2, %v671
    %v673 = vrot.slane %v660, %v672
    %v674 = vlaneseq
    %v675 = vshrl.u32 %v674, 7
    %v676 = vsub.s32 3, %v675
    %v677 = vrot.slane %v660, %v676
    %v683 = vunpack.c.l.b16 %v593
    %v684 = vunpack.c.h.b16 %v593
    %v685 = vpack.c.b16 %v683, %v683
    %v686 = vpack.c.b16 %v684, %v684
    %v753 = vunpack.c.l.b16 %v595
    %v754 = vunpack.c.h.b16 %v595
    %v755 = vunpack.c.l.b16 %v596
    %v756 = vunpack.c.h.b16 %v596
    %v757 = vunpack.c.l.b16 %v597
    %v758 = vunpack.c.h.b16 %v597
    %v759 = vunpack.c.l.b16 %v598
    %v760 = vunpack.c.h.b16 %v598
    %v761 = vunpack.c.l.b16 %v599
    %v762 = vunpack.c.h.b16 %v599
    %v763 = vunpack.c.l.b16 %v600
    %v764 = vunpack.c.h.b16 %v600
    %v765 = vunpack.c.l.b16 %v601
    %v766 = vunpack.c.h.b16 %v601
    %v767 = vunpack.c.l.b16 %v602
    %v768 = vunpack.c.h.b16 %v602
    %v769 = vunpack.c.l.b16 %v603
    %v770 = vunpack.c.h.b16 %v603
    %v771 = vunpack.c.l.b16 %v604
    %v772 = vunpack.c.h.b16 %v604
    %v773 = vunpack.c.l.b16 %v605
    %v774 = vunpack.c.h.b16 %v605
    %v775 = vunpack.c.l.b16 %v606
    %v776 = vunpack.c.h.b16 %v606
    %v777 = vunpack.c.l.b16 %v607
    %v778 = vunpack.c.h.b16 %v607
    %v779 = vunpack.c.l.b16 %v608
    %v780 = vunpack.c.h.b16 %v608
    %v781 = vunpack.c.l.b16 %v609
    %v782 = vunpack.c.h.b16 %v609
    %v783 = vunpack.c.l.b16 %v610
    %v784 = vunpack.c.h.b16 %v610
    %v785 = vunpack.c.l.b16 %v611
    %v786 = vunpack.c.h.b16 %v611
    %v787 = vunpack.c.l.b16 %v612
    %v788 = vunpack.c.h.b16 %v612
    %v789 = vunpack.c.l.b16 %v613
    %v790 = vunpack.c.h.b16 %v613
    %v791 = vunpack.c.l.b16 %v614
    %v792 = vunpack.c.h.b16 %v614
    %v793 = vunpack.c.l.b16 %v615
    %v794 = vunpack.c.h.b16 %v615
    %v795 = vunpack.c.l.b16 %v616
    %v796 = vunpack.c.h.b16 %v616
    %v797 = vunpack.c.l.b16 %v617
    %v798 = vunpack.c.h.b16 %v617
    %v799 = vunpack.c.l.b16 %v618
    %v800 = vunpack.c.h.b16 %v618
    %v801 = vunpack.c.l.b16 %v619
    %v802 = vunpack.c.h.b16 %v619
    %v803 = vunpack.c.l.b16 %v620
    %v804 = vunpack.c.h.b16 %v620
    %v805 = vunpack.c.l.b16 %v621
    %v806 = vunpack.c.h.b16 %v621
    %v807 = vunpack.c.l.b16 %v622
    %v808 = vunpack.c.h.b16 %v622
    %v809 = vunpack.c.l.b16 %v623
    %v810 = vunpack.c.h.b16 %v623
    %v811 = vunpack.c.l.b16 %v624
    %v812 = vunpack.c.h.b16 %v624
    %v813 = vunpack.c.l.b16 %v625
    %v814 = vunpack.c.h.b16 %v625
    %v815 = vunpack.c.l.b16 %v626
    %v816 = vunpack.c.h.b16 %v626
    %v817 = vunpack.c.l.b16 %v627
    %v818 = vunpack.c.h.b16 %v627
    %v819 = vunpack.c.l.b16 %v628
    %v820 = vunpack.c.h.b16 %v628
    %v821 = vunpack.c.l.b16 %v629
    %v822 = vunpack.c.h.b16 %v629
    %v823 = vunpack.c.l.b16 %v630
    %v824 = vunpack.c.h.b16 %v630
    %v825 = vunpack.c.l.b16 %v631
    %v826 = vunpack.c.h.b16 %v631
    %v827 = vunpack.c.l.b16 %v632
    %v828 = vunpack.c.h.b16 %v632
    %v829 = vunpack.c.l.b16 %v633
    %v830 = vunpack.c.h.b16 %v633
    %v831 = vunpack.c.l.b16 %v634
    %v832 = vunpack.c.h.b16 %v634
    %v833 = vunpack.c.l.b16 %v635
    %v834 = vunpack.c.h.b16 %v635
    %v835 = vunpack.c.l.b16 %v636
    %v836 = vunpack.c.h.b16 %v636
    %v837 = vunpack.c.l.b16 %v637
    %v838 = vunpack.c.h.b16 %v637
    %v839 = vunpack.c.l.b16 %v638
    %v840 = vunpack.c.h.b16 %v638
    %v841 = vunpack.c.l.b16 %v639
    %v842 = vunpack.c.h.b16 %v639
    %v843 = vunpack.c.l.b16 %v640
    %v844 = vunpack.c.h.b16 %v640
    %v845 = vunpack.c.l.b16 %v641
    %v846 = vunpack.c.h.b16 %v641
    %v847 = vunpack.c.l.b16 %v642
    %v848 = vunpack.c.h.b16 %v642
    %v849 = vunpack.c.l.b16 %v643
    %v850 = vunpack.c.h.b16 %v643
    %v851 = vunpack.c.l.b16 %v644
    %v852 = vunpack.c.h.b16 %v644
    %v853 = vunpack.c.l.b16 %v645
    %v854 = vunpack.c.h.b16 %v645
    %v855 = vunpack.c.l.b16 %v646
    %v856 = vunpack.c.h.b16 %v646
    %v857 = vunpack.c.l.b16 %v647
    %v858 = vunpack.c.h.b16 %v647
    %v859 = vunpack.c.l.b16 %v648
    %v860 = vunpack.c.h.b16 %v648
    %v861 = vunpack.c.l.b16 %v649
    %v862 = vunpack.c.h.b16 %v649
    %v863 = vunpack.c.l.b16 %v650
    %v864 = vunpack.c.h.b16 %v650
    %v865 = vunpack.c.l.b16 %v651
    %v866 = vunpack.c.h.b16 %v651
    %v867 = vunpack.c.l.b16 %v652
    %v868 = vunpack.c.h.b16 %v652
    %v869 = vunpack.c.l.b16 %v653
    %v870 = vunpack.c.h.b16 %v653
    %v871 = vunpack.c.l.b16 %v654
    %v872 = vunpack.c.h.b16 %v654
    %v873 = vunpack.c.l.b16 %v655
    %v874 = vunpack.c.h.b16 %v655
    %v875 = vunpack.c.l.b16 %v656
    %v876 = vunpack.c.h.b16 %v656
    %v877 = vunpack.c.l.b16 %v657
    %v878 = vunpack.c.h.b16 %v657
    %v879 = vunpack.c.l.b16 %v658
    %v880 = vunpack.c.h.b16 %v658
    %v881 = vpack.c.b16 %v757, %v753
    %v882 = vpack.c.b16 %v758, %v754
    %v883 = vpack.c.b16 %v759, %v755
    %v884 = vpack.c.b16 %v760, %v756
    %v885 = vpack.c.b16 %v765, %v761
    %v886 = vpack.c.b16 %v766, %v762
    %v887 = vpack.c.b16 %v767, %v763
    %v888 = vpack.c.b16 %v768, %v764
    %v889 = vpack.c.b16 %v773, %v769
    %v890 = vpack.c.b16 %v774, %v770
    %v891 = vpack.c.b16 %v775, %v771
    %v892 = vpack.c.b16 %v776, %v772
    %v893 = vpack.c.b16 %v781, %v777
    %v894 = vpack.c.b16 %v782, %v778
    %v895 = vpack.c.b16 %v783, %v779
    %v896 = vpack.c.b16 %v784, %v780
    %v897 = vpack.c.b16 %v789, %v785
    %v898 = vpack.c.b16 %v790, %v786
    %v899 = vpack.c.b16 %v791, %v787
    %v900 = vpack.c.b16 %v792, %v788
    %v901 = vpack.c.b16 %v797, %v793
    %v902 = vpack.c.b16 %v798, %v794
    %v903 = vpack.c.b16 %v799, %v795
    %v904 = vpack.c.b16 %v800, %v796
    %v905 = vpack.c.b16 %v805, %v801
    %v906 = vpack.c.b16 %v806, %v802
    %v907 = vpack.c.b16 %v807, %v803
    %v908 = vpack.c.b16 %v808, %v804
    %v909 = vpack.c.b16 %v813, %v809
    %v910 = vpack.c.b16 %v814, %v810
    %v911 = vpack.c.b16 %v815, %v811
    %v912 = vpack.c.b16 %v816, %v812
    %v913 = vpack.c.b16 %v821, %v817
    %v914 = vpack.c.b16 %v822, %v818
    %v915 = vpack.c.b16 %v823, %v819
    %v916 = vpack.c.b16 %v824, %v820
    %v917 = vpack.c.b16 %v829, %v825
    %v918 = vpack.c.b16 %v830, %v826
    %v919 = vpack.c.b16 %v831, %v827
    %v920 = vpack.c.b16 %v832, %v828
    %v921 = vpack.c.b16 %v837, %v833
    %v922 = vpack.c.b16 %v838, %v834
    %v923 = vpack.c.b16 %v839, %v835
    %v924 = vpack.c.b16 %v840, %v836
    %v925 = vpack.c.b16 %v845, %v841
    %v926 = vpack.c.b16 %v846, %v842
    %v927 = vpack.c.b16 %v847, %v843
    %v928 = vpack.c.b16 %v848, %v844
    %v929 = vpack.c.b16 %v853, %v849
    %v930 = vpack.c.b16 %v854, %v850
    %v931 = vpack.c.b16 %v855, %v851
    %v932 = vpack.c.b16 %v856, %v852
    %v933 = vpack.c.b16 %v861, %v857
    %v934 = vpack.c.b16 %v862, %v858
    %v935 = vpack.c.b16 %v863, %v859
    %v936 = vpack.c.b16 %v864, %v860
    %v937 = vpack.c.b16 %v869, %v865
    %v938 = vpack.c.b16 %v870, %v866
    %v939 = vpack.c.b16 %v871, %v867
    %v940 = vpack.c.b16 %v872, %v868
    %v941 = vpack.c.b16 %v877, %v873
    %v942 = vpack.c.b16 %v878, %v874
    %v943 = vpack.c.b16 %v879, %v875
    %v944 = vpack.c.b16 %v880, %v876
    %1009 = vmatprep.subr.bf16.mxu0 %v910
    %1010 = vmatpush1.bf16.msra.mxu0 %v909
    %1011 = vmatprep.subr.bf16.mxu0 %v906
    %1012 = vmatpush1.bf16.msra.mxu0 %v905
    %1013 = vmatprep.subr.bf16.mxu0 %v902
    %1014 = vmatpush1.bf16.msra.mxu0 %v901
    %1015 = vmatprep.subr.bf16.mxu0 %v898
    %1016 = vmatpush1.bf16.msra.mxu0 %v897
    %1017 = vmatprep.subr.bf16.mxu0 %v894
    %1018 = vmatpush1.bf16.msra.mxu0 %v893
    %1019 = vmatprep.subr.bf16.mxu0 %v890
    %1020 = vmatpush1.bf16.msra.mxu0 %v889
    %1021 = vmatprep.subr.bf16.mxu0 %v886
    %1022 = vmatpush1.bf16.msra.mxu0 %v885
    %1023 = vmatprep.subr.bf16.mxu0 %v882
    %1024 = vmatpush1.bf16.msra.mxu0 %v881
    %1025 = vmatprep.subr.bf16.mxu0 %v942
    %1026 = vmatpush2.bf16.msra.mxu0 %v941
    %1027 = vmatprep.subr.bf16.mxu0 %v938
    %1028 = vmatpush2.bf16.msra.mxu0 %v937
    %1029 = vmatprep.subr.bf16.mxu0 %v934
    %1030 = vmatpush2.bf16.msra.mxu0 %v933
    %1031 = vmatprep.subr.bf16.mxu0 %v930
    %1032 = vmatpush2.bf16.msra.mxu0 %v929
    %1033 = vmatprep.subr.bf16.mxu0 %v926
    %1034 = vmatpush2.bf16.msra.mxu0 %v925
    %1035 = vmatprep.subr.bf16.mxu0 %v922
    %1036 = vmatpush2.bf16.msra.mxu0 %v921
    %1037 = vmatprep.subr.bf16.mxu0 %v918
    %1038 = vmatpush2.bf16.msra.mxu0 %v917
    %1039 = vmatprep.subr.bf16.mxu0 %v914
    %1040 = vmatpush2.bf16.msra.mxu0 %v913
    %1041 = vmatprep.mubr.bf16.mxu0 %v686
    %1042 = vmatmul.mubr.bf16.gmra.mxu0 %v685
    %v1043 = vpop.f32.mrf.mxu0
    %v1044 = vadd.f32 %v665, %v1043
    %v1045 = vpop.f32.mrf.mxu0
    %v1046 = vadd.f32 %v669, %v1045
    %v1047 = vpop.f32.mrf.mxu0
    %v1048 = vpop.f32.mrf.mxu0
    %1049 = vdwg.mxu0
    %1050 = vmatprep.subr.bf16.mxu0 %v912
    %1051 = vmatpush1.bf16.msra.mxu0 %v911
    %1052 = vmatprep.subr.bf16.mxu0 %v908
    %1053 = vmatpush1.bf16.msra.mxu0 %v907
    %1054 = vmatprep.subr.bf16.mxu0 %v904
    %1055 = vmatpush1.bf16.msra.mxu0 %v903
    %1056 = vmatprep.subr.bf16.mxu0 %v900
    %1057 = vmatpush1.bf16.msra.mxu0 %v899
    %1058 = vmatprep.subr.bf16.mxu0 %v896
    %1059 = vmatpush1.bf16.msra.mxu0 %v895
    %1060 = vmatprep.subr.bf16.mxu0 %v892
    %1061 = vmatpush1.bf16.msra.mxu0 %v891
    %1062 = vmatprep.subr.bf16.mxu0 %v888
    %1063 = vmatpush1.bf16.msra.mxu0 %v887
    %1064 = vmatprep.subr.bf16.mxu0 %v884
    %1065 = vmatpush1.bf16.msra.mxu0 %v883
    %1066 = vmatprep.subr.bf16.mxu0 %v944
    %1067 = vmatpush2.bf16.msra.mxu0 %v943
    %1068 = vmatprep.subr.bf16.mxu0 %v940
    %1069 = vmatpush2.bf16.msra.mxu0 %v939
    %1070 = vmatprep.subr.bf16.mxu0 %v936
    %1071 = vmatpush2.bf16.msra.mxu0 %v935
    %1072 = vmatprep.subr.bf16.mxu0 %v932
    %1073 = vmatpush2.bf16.msra.mxu0 %v931
    %1074 = vmatprep.subr.bf16.mxu0 %v928
    %1075 = vmatpush2.bf16.msra.mxu0 %v927
    %1076 = vmatprep.subr.bf16.mxu0 %v924
    %1077 = vmatpush2.bf16.msra.mxu0 %v923
    %1078 = vmatprep.subr.bf16.mxu0 %v920
    %1079 = vmatpush2.bf16.msra.mxu0 %v919
    %1080 = vmatprep.subr.bf16.mxu0 %v916
    %1081 = vmatpush2.bf16.msra.mxu0 %v915
    %1082 = vmatprep.mubr.bf16.mxu0 %v686
    %1083 = vmatmul.mubr.bf16.gmra.mxu0 %v685
    %v1084 = vpop.f32.mrf.mxu0
    %v1085 = vadd.f32 %v673, %v1084
    %v1086 = vpop.f32.mrf.mxu0
    %v1087 = vadd.f32 %v677, %v1086
    %v1088 = vpop.f32.mrf.mxu0
    %v1089 = vpop.f32.mrf.mxu0
    %1090 = vdwg.mxu0
    %v1091 = vxor.u32 %v1044, 2147483648
    %v1092 = vxor.u32 %v1046, 2147483648
    %v1093 = vxor.u32 %v1085, 2147483648
    %v1094 = vmul.f32 %v1091, 1.442695
    %v1095 = vpow.pop %v1094
    %v1096 = vmul.f32 %v1092, 1.442695
    %v1097 = vpow.pop %v1096
    %v1098 = vmul.f32 %v1093, 1.442695
    %v1099 = vpow.pop %v1098
    %v1100 = vadd.f32 %v1095, 1.0
    %v1101 = vadd.f32 %v1097, 1.0
    %v1102 = vadd.f32 %v1099, 1.0
    %v1103 = vrcp.pop %v1100
    %v1104 = vmul.f32 1.0, %v1103
    %v1105 = vrcp.pop %v1101
    %v1106 = vmul.f32 1.0, %v1105
    %v1107 = vrcp.pop %v1102
    %v1108 = vmul.f32 1.0, %v1107
    %v1109 = vtanh.pop %v1087
    %s1110 = scalar_lea.vmem %s2, 8
    %v1111 = vld [vmem:[%s1110] sm:$0xff]
    %v1112 = vmul.f32 %v1106, %v1111
    %v1113 = vmul.f32 %v1104, %v1109
    %v1114 = vadd.f32 %v1112, %v1113
    %v1115 = vtanh.pop %v1114
    %v1116 = vmul.f32 %v1108, %v1115
    %s1117 = scalar_lea.vmem %s7, 8
    %1118 = vst [vmem:[%s1117] sm:$0xff] %v1116
    %s1119 = scalar_lea.vmem %s8, 8
    %1120 = vst [vmem:[%s1119] sm:$0xff] %v1114
    %v1121 = vpack.c.bf16 %v1116, %v1116
    %v1122 = vld [vmem:[#allocation5] sm:$0xf]
    %v1123 = vld [vmem:[#allocation5 + $0x4] sm:$0xf]
    %v1124 = vld [vmem:[#allocation5 + $0x8] sm:$0xf]
    %v1125 = vld [vmem:[#allocation5 + $0xc] sm:$0xf]
    %v1126 = vld [vmem:[#allocation5 + $0x10] sm:$0xf]
    %v1127 = vld [vmem:[#allocation5 + $0x14] sm:$0xf]
    %v1128 = vld [vmem:[#allocation5 + $0x18] sm:$0xf]
    %v1129 = vld [vmem:[#allocation5 + $0x1c] sm:$0xf]
    %v1130 = vld [vmem:[#allocation5 + $0x20] sm:$0xf]
    %v1131 = vld [vmem:[#allocation5 + $0x24] sm:$0xf]
    %v1132 = vld [vmem:[#allocation5 + $0x28] sm:$0xf]
    %v1133 = vld [vmem:[#allocation5 + $0x2c] sm:$0xf]
    %v1134 = vld [vmem:[#allocation5 + $0x30] sm:$0xf]
    %v1135 = vld [vmem:[#allocation5 + $0x34] sm:$0xf]
    %v1136 = vld [vmem:[#allocation5 + $0x38] sm:$0xf]
    %v1137 = vld [vmem:[#allocation5 + $0x3c] sm:$0xf]
    %v1138 = vld [vmem:[%s6] sm:$0x1]
    %v1140 = vlaneseq
    %v1141 = vshrl.u32 %v1140, 7
    %v1142 = vsub.s32 0, %v1141
    %v1143 = vrot.slane %v1138, %v1142
    %v1161 = vunpack.c.l.b16 %v1122
    %v1162 = vunpack.c.l.b16 %v1123
    %v1163 = vunpack.c.l.b16 %v1124
    %v1164 = vunpack.c.l.b16 %v1125
    %v1165 = vunpack.c.l.b16 %v1126
    %v1166 = vunpack.c.l.b16 %v1127
    %v1167 = vunpack.c.l.b16 %v1128
    %v1168 = vunpack.c.l.b16 %v1129
    %v1169 = vunpack.c.l.b16 %v1130
    %v1170 = vunpack.c.l.b16 %v1131
    %v1171 = vunpack.c.l.b16 %v1132
    %v1172 = vunpack.c.l.b16 %v1133
    %v1173 = vunpack.c.l.b16 %v1134
    %v1174 = vunpack.c.l.b16 %v1135
    %v1175 = vunpack.c.l.b16 %v1136
    %v1176 = vunpack.c.l.b16 %v1137
    %v1177 = vpack.c.b16 %v1162, %v1161
    %v1178 = vpack.c.b16 %v1164, %v1163
    %v1179 = vpack.c.b16 %v1166, %v1165
    %v1180 = vpack.c.b16 %v1168, %v1167
    %v1181 = vpack.c.b16 %v1170, %v1169
    %v1182 = vpack.c.b16 %v1172, %v1171
    %v1183 = vpack.c.b16 %v1174, %v1173
    %v1184 = vpack.c.b16 %v1176, %v1175
    %1193 = vmatprep.subr.bf16.mxu0 0
    %1194 = vmatpush1.bf16.msra.mxu0 %v1184
    %1195 = vmatprep.subr.bf16.mxu0 0
    %1196 = vmatpush1.bf16.msra.mxu0 %v1183
    %1197 = vmatprep.subr.bf16.mxu0 0
    %1198 = vmatpush1.bf16.msra.mxu0 %v1182
    %1199 = vmatprep.subr.bf16.mxu0 0
    %1200 = vmatpush1.bf16.msra.mxu0 %v1181
    %1201 = vmatprep.subr.bf16.mxu0 0
    %1202 = vmatpush1.bf16.msra.mxu0 %v1180
    %1203 = vmatprep.subr.bf16.mxu0 0
    %1204 = vmatpush1.bf16.msra.mxu0 %v1179
    %1205 = vmatprep.subr.bf16.mxu0 0
    %1206 = vmatpush1.bf16.msra.mxu0 %v1178
    %1207 = vmatprep.subr.bf16.mxu0 0
    %1208 = vmatpush1.bf16.msra.mxu0 %v1177
    %1209 = vmatprep.subr.bf16.mxu0 0
    %1210 = vmatpush2.bf16.msra.mxu0 0
    %1211 = vmatprep.subr.bf16.mxu0 0
    %1212 = vmatpush2.bf16.msra.mxu0 0
    %1213 = vmatprep.subr.bf16.mxu0 0
    %1214 = vmatpush2.bf16.msra.mxu0 0
    %1215 = vmatprep.subr.bf16.mxu0 0
    %1216 = vmatpush2.bf16.msra.mxu0 0
    %1217 = vmatprep.subr.bf16.mxu0 0
    %1218 = vmatpush2.bf16.msra.mxu0 0
    %1219 = vmatprep.subr.bf16.mxu0 0
    %1220 = vmatpush2.bf16.msra.mxu0 0
    %1221 = vmatprep.subr.bf16.mxu0 0
    %1222 = vmatpush2.bf16.msra.mxu0 0
    %1223 = vmatprep.subr.bf16.mxu0 0
    %1224 = vmatpush2.bf16.msra.mxu0 0
    %1225 = vmatprep.mubr.bf16.mxu0 0
    %1226 = vmatmul.mubr.bf16.gmra.mxu0 %v1121
    %v1227 = vpop.f32.mrf.mxu0
    %v1228 = vadd.f32 %v1143, %v1227
    %v1229 = vpop.f32.mrf.mxu0
    %v1230 = vpop.f32.mrf.mxu0
    %v1231 = vpop.f32.mrf.mxu0
    %1232 = vdwg.mxu0
    %1233 = vst [vmem:[%s9] sm:$0xff] %v1228
    // Predicated region
    $region38: #{lstm_decoder_forward.1} parent=1 // pred_check
      _
    $region39: #{lstm_decoder_forward.1} parent=1 // pred_check_branch
      %1235 = sbr.rel (0) target = $region41
    $region40: #{lstm_decoder_forward.1} parent=1 // pred_region
      _
    $region41: #{lstm_decoder_forward.1} parent=1 // pred_fallthru
      _
    // Predicated region
    $region42: #{lstm_decoder_forward.1} parent=1 // pred_check
      _
    $region43: #{lstm_decoder_forward.1} parent=1 // pred_check_branch
      %1237 = sbr.rel (0) target = $region45
    $region44: #{lstm_decoder_forward.1} parent=1 // pred_region
      _
    $region45: #{lstm_decoder_forward.1} parent=1 // pred_fallthru
      _
    // Predicated region
    $region46: #{lstm_decoder_forward.1} parent=1 // pred_check
      _
    $region47: #{lstm_decoder_forward.1} parent=1 // pred_check_branch
      %1239 = sbr.rel (0) target = $region49
    $region48: #{lstm_decoder_forward.1} parent=1 // pred_region
      _
    $region49: #{lstm_decoder_forward.1} parent=1 // pred_fallthru
      _
    // Predicated region
    $region50: #{lstm_decoder_forward.1} parent=1 // pred_check
      _
    $region51: #{lstm_decoder_forward.1} parent=1 // pred_check_branch
      %1241 = sbr.rel (0) target = $region53
    $region52: #{lstm_decoder_forward.1} parent=1 // pred_region
      _
    $region53: #{lstm_decoder_forward.1} parent=1 // pred_fallthru
      _
    // Predicated region
    $region54: #{lstm_decoder_forward.1} parent=1 // pred_check
      _
    $region55: #{lstm_decoder_forward.1} parent=1 // pred_check_branch
      %1243 = sbr.rel (0) target = $region57
    $region56: #{lstm_decoder_forward.1} parent=1 // pred_region
      _
    $region57: #{lstm_decoder_forward.1} parent=1 // pred_fallthru
      _
    // Predicated region
    $region58: #{lstm_decoder_forward.1} parent=1 // pred_check
      _
    $region59: #{lstm_decoder_forward.1} parent=1 // pred_check_branch
      %1245 = sbr.rel (0) target = $region61
    $region60: #{lstm_decoder_forward.1} parent=1 // pred_region
      _
    $region61: #{lstm_decoder_forward.1} parent=1 // pred_fallthru
      _
    %1246 = vsyncpa [#allocation4], 1
    %1247 = vsyncpa [#allocation6], 1

</llo_original>
